<compile_context>
chip_gen: v7x
topology: tpu7x:2x2x1
jax: 0.10.0
libtpu: 0.0.40
codegen_flags: <defaults>
</compile_context>

<pallas_src>
import functools

import jax
import jax.numpy as jnp
from jax import lax
from jax.experimental import pallas as pl
from jax.experimental.pallas import tpu as pltpu

_LANES = 128


def _round_up(x, m):
    return ((x + m - 1) // m) * m


def _pointwise_loss(pre_ref, ref_ref, car_length, weight):
    """Per-element weighted rear/front distance on a (rows, 128) lane-dense tile."""
    px = pre_ref[0].astype(jnp.float32)
    py = pre_ref[1].astype(jnp.float32)
    pt = pre_ref[2].astype(jnp.float32)
    rx = ref_ref[0].astype(jnp.float32)
    ry = ref_ref[1].astype(jnp.float32)
    rt = ref_ref[2].astype(jnp.float32)

    # rear (xy1) delta
    dx1 = rx - px
    dy1 = ry - py
    # front (xy2) delta: xy2 = xy1 + car_length * [cos, sin](theta)
    dx2 = dx1 + car_length * (jnp.cos(rt) - jnp.cos(pt))
    dy2 = dy1 + car_length * (jnp.sin(rt) - jnp.sin(pt))

    loss_xy1 = jnp.sqrt(dx1 * dx1 + dy1 * dy1)
    loss_xy2 = jnp.sqrt(dx2 * dx2 + dy2 * dy2)
    return loss_xy1 * weight + loss_xy2 * (1.0 - weight)


def _reduce_kernel(pre_ref, ref_ref, sum_ref, max_ref, min_ref, *,
                   car_length, weight, block_rows, n_valid):
    loss = _pointwise_loss(pre_ref, ref_ref, car_length, weight)

    # Validity mask for the zero-padded tail (only matters in the last tile).
    base = pl.program_id(0) * (block_rows * _LANES)
    rows = lax.broadcasted_iota(jnp.int32, loss.shape, 0)
    lanes = lax.broadcasted_iota(jnp.int32, loss.shape, 1)
    valid = (base + rows * _LANES + lanes) < n_valid

    # Zero-padded inputs produce loss == 0 exactly, so the sum needs no mask.
    tile_sum = jnp.sum(loss)
    tile_max = jnp.max(jnp.where(valid, loss, -jnp.inf))
    tile_min = jnp.min(jnp.where(valid, loss, jnp.inf))

    # Store as full (1, 8, 128) aligned tiles (unmasked vst); consumer reads [i,0,0].
    sum_ref[...] = jnp.broadcast_to(tile_sum.reshape(1, 1, 1), sum_ref.shape)
    max_ref[...] = jnp.broadcast_to(tile_max.reshape(1, 1, 1), max_ref.shape)
    min_ref[...] = jnp.broadcast_to(tile_min.reshape(1, 1, 1), min_ref.shape)


def _map_kernel(pre_ref, ref_ref, loss_ref, *, car_length, weight):
    loss_ref[...] = _pointwise_loss(pre_ref, ref_ref, car_length, weight)


def _pack_channels(x, L, N):
    """One transpose/reshape per tensor -> lane-dense [3, N] (x, y, theta)."""
    if L == 3:
        c = jnp.moveaxis(x, -1, 0)          # [3, B, T, A]
    else:
        c = jnp.stack([x[..., 0], x[..., 1], x[..., L - 1]], axis=0)
    return c.reshape(3, N)


def criterion_dis(pre, ref, car_length=4.0, weight=0.5, reduction='mean',
                  block_rows=1024):
    """JAX/Pallas equivalent of Criterion_Dis.forward."""
    if pre.shape != ref.shape or pre.ndim != 4 or ref.ndim != 4:
        raise Exception(
            f'The shape of [pre] or [ref] in Criterion_Dis is not right: '
            f'[pre]: {pre.shape}, [ref]: {ref.shape}')

    B, T, A, L = pre.shape
    N = B * T * A

    pre_c = _pack_channels(pre, L, N)
    ref_c = _pack_channels(ref, L, N)

    rows_total = -(-N // _LANES)                              # ceil(N / 128)
    br = max(8, min(int(block_rows), _round_up(rows_total, 8)))
    rows_pad = _round_up(rows_total, br)
    num_tiles = rows_pad // br
    n_pad = rows_pad * _LANES

    if n_pad != N:
        pre_c = jnp.pad(pre_c, ((0, 0), (0, n_pad - N)))
        ref_c = jnp.pad(ref_c, ((0, 0), (0, n_pad - N)))
    pre_c = pre_c.reshape(3, rows_pad, _LANES)
    ref_c = ref_c.reshape(3, rows_pad, _LANES)

    in_specs = [pl.BlockSpec((3, br, _LANES), lambda i: (0, i, 0))] * 2
    cparams = pltpu.CompilerParams(dimension_semantics=("parallel",))

    if reduction in ('mean', 'sum', 'max', 'min'):
        kernel = functools.partial(
            _reduce_kernel, car_length=float(car_length), weight=float(weight),
            block_rows=br, n_valid=N)
        part_spec = pl.BlockSpec((1, 8, _LANES), lambda i: (i, 0, 0))
        part_shape = jax.ShapeDtypeStruct((num_tiles, 8, _LANES), jnp.float32)
        psum, pmax, pmin = pl.pallas_call(
            kernel,
            grid=(num_tiles,),
            out_shape=(part_shape, part_shape, part_shape),
            in_specs=in_specs,
            out_specs=(part_spec, part_spec, part_spec),
            compiler_params=cparams,
        )(pre_c, ref_c)
        if reduction == 'mean':
            return jnp.sum(psum[:, 0, 0]) / N
        if reduction == 'sum':
            return jnp.sum(psum[:, 0, 0])
        if reduction == 'max':
            return jnp.max(pmax[:, 0, 0])
        return jnp.min(pmin[:, 0, 0])

    if reduction == 'none':
        kernel = functools.partial(
            _map_kernel, car_length=float(car_length), weight=float(weight))
        loss_map = pl.pallas_call(
            kernel,
            grid=(num_tiles,),
            out_shape=jax.ShapeDtypeStruct((rows_pad, _LANES), jnp.float32),
            in_specs=in_specs,
            out_specs=pl.BlockSpec((br, _LANES), lambda i: (i, 0)),
            compiler_params=cparams,
        )(pre_c, ref_c)
        return loss_map.reshape(-1)[:N].reshape(B, T, A, 1)

    print(f'The reduction [{reduction}] is useless. Waste my time!!!')
    return None


def _criterion_dis_ref(pre, ref, car_length=4.0, weight=0.5, reduction='mean'):
    """Pure-JAX reference mirroring the PyTorch forward exactly."""
    def cal_front_from_rear(inp):
        xy1 = inp[:, :, :, 0:2]
        ang = jnp.concatenate(
            (jnp.cos(inp[:, :, :, -1:]), jnp.sin(inp[:, :, :, -1:])), axis=-1)
        xy2 = xy1 + car_length * ang
        return jnp.concatenate((xy1, xy2), axis=-1)

    pre_xy = cal_front_from_rear(pre)
    ref_xy = cal_front_from_rear(ref)
    delta = ref_xy - pre_xy
    l1 = jnp.sqrt(jnp.sum(delta[:, :, :, 0:2] ** 2, axis=-1, keepdims=True))
    l2 = jnp.sqrt(jnp.sum(delta[:, :, :, 2:4] ** 2, axis=-1, keepdims=True))
    loss = l1 * weight + l2 * (1 - weight)
    if reduction == 'none':
        return loss
    if reduction == 'mean':
        return loss.mean()
    if reduction == 'sum':
        return loss.sum()
    if reduction == 'max':
        return loss.max()
    return loss.min()


if __name__ == "__main__":
    key = jax.random.PRNGKey(0)
    k1, k2, k3, k4 = jax.random.split(key, 4)

    # Small case: [B, num_steps, num_anchor_per_step, len_info_loc] = (x, y, theta)
    B, T, A, L = 2, 8, 4, 3
    pre = jax.random.normal(k1, (B, T, A, L), dtype=jnp.float32)
    ref = jax.random.normal(k2, (B, T, A, L), dtype=jnp.float32)

    for red in ('mean', 'sum', 'max', 'min', 'none'):
        out = jax.block_until_ready(criterion_dis(pre, ref, reduction=red))
        exp = _criterion_dis_ref(pre, ref, reduction=red)
        assert out.shape == exp.shape, (red, out.shape, exp.shape)
        assert jnp.allclose(out, exp, rtol=1e-5, atol=1e-5), (red, out, exp)

    # Larger case exercising the multi-tile grid + padded tail (L > 3).
    B2, T2, A2, L2 = 2, 40, 16, 4
    pre2 = jax.random.normal(k3, (B2, T2, A2, L2), dtype=jnp.float32)
    ref2 = jax.random.normal(k4, (B2, T2, A2, L2), dtype=jnp.float32)
    for red in ('mean', 'sum', 'max', 'min', 'none'):
        out = jax.block_until_ready(
            criterion_dis(pre2, ref2, reduction=red, block_rows=8))
        exp = _criterion_dis_ref(pre2, ref2, reduction=red)
        assert out.shape == exp.shape, (red, out.shape, exp.shape)
        assert jnp.allclose(out, exp, rtol=1e-5, atol=1e-4), (red, out, exp)

    print("KERNEL_OK")
</pallas_src>

<mosaic_0001>
module attributes {stable_mosaic.version = 11 : i64} {
  func.func @_reduce_kernel(%arg0: i32, %arg1: memref<3x8x128xf32, #tpu.memory_space<vmem>>, %arg2: memref<3x8x128xf32, #tpu.memory_space<vmem>>, %arg3: memref<1x8x128xf32, #tpu.memory_space<vmem>>, %arg4: memref<1x8x128xf32, #tpu.memory_space<vmem>>, %arg5: memref<1x8x128xf32, #tpu.memory_space<vmem>>) attributes {dimension_semantics = [#tpu.dimension_semantics<parallel>], iteration_bounds = array<i64: 1>, scalar_prefetch = 0 : i64, scratch_operands = 0 : i64, tpu.core_type = #tpu.core_type<tc>, window_params = [{transform_indices = @transform_0, window_bounds = array<i64: 3, 8, 128>}, {transform_indices = @transform_1, window_bounds = array<i64: 3, 8, 128>}, {transform_indices = @transform_2, window_bounds = array<i64: 1, 8, 128>}, {transform_indices = @transform_3, window_bounds = array<i64: 1, 8, 128>}, {transform_indices = @transform_4, window_bounds = array<i64: 1, 8, 128>}]} {
    %c0 = arith.constant 0 : index
    %c0_0 = arith.constant 0 : index
    %c0_1 = arith.constant 0 : index
    %0 = vector.load %arg1[%c0, %c0_0, %c0_1] : memref<3x8x128xf32, #tpu.memory_space<vmem>>, vector<1x8x128xf32>
    %1 = vector.shape_cast %0 : vector<1x8x128xf32> to vector<8x128xf32>
    %c1 = arith.constant 1 : index
    %c0_2 = arith.constant 0 : index
    %c0_3 = arith.constant 0 : index
    %2 = vector.load %arg1[%c1, %c0_2, %c0_3] : memref<3x8x128xf32, #tpu.memory_space<vmem>>, vector<1x8x128xf32>
    %3 = vector.shape_cast %2 : vector<1x8x128xf32> to vector<8x128xf32>
    %c2 = arith.constant 2 : index
    %c0_4 = arith.constant 0 : index
    %c0_5 = arith.constant 0 : index
    %4 = vector.load %arg1[%c2, %c0_4, %c0_5] : memref<3x8x128xf32, #tpu.memory_space<vmem>>, vector<1x8x128xf32>
    %5 = vector.shape_cast %4 : vector<1x8x128xf32> to vector<8x128xf32>
    %c0_6 = arith.constant 0 : index
    %c0_7 = arith.constant 0 : index
    %c0_8 = arith.constant 0 : index
    %6 = vector.load %arg2[%c0_6, %c0_7, %c0_8] : memref<3x8x128xf32, #tpu.memory_space<vmem>>, vector<1x8x128xf32>
    %7 = vector.shape_cast %6 : vector<1x8x128xf32> to vector<8x128xf32>
    %c1_9 = arith.constant 1 : index
    %c0_10 = arith.constant 0 : index
    %c0_11 = arith.constant 0 : index
    %8 = vector.load %arg2[%c1_9, %c0_10, %c0_11] : memref<3x8x128xf32, #tpu.memory_space<vmem>>, vector<1x8x128xf32>
    %9 = vector.shape_cast %8 : vector<1x8x128xf32> to vector<8x128xf32>
    %c2_12 = arith.constant 2 : index
    %c0_13 = arith.constant 0 : index
    %c0_14 = arith.constant 0 : index
    %10 = vector.load %arg2[%c2_12, %c0_13, %c0_14] : memref<3x8x128xf32, #tpu.memory_space<vmem>>, vector<1x8x128xf32>
    %11 = vector.shape_cast %10 : vector<1x8x128xf32> to vector<8x128xf32>
    %12 = arith.subf %7, %1 : vector<8x128xf32>
    %13 = arith.subf %9, %3 : vector<8x128xf32>
    %14 = math.cos %11 : vector<8x128xf32>
    %15 = math.cos %5 : vector<8x128xf32>
    %16 = arith.subf %14, %15 : vector<8x128xf32>
    %cst = arith.constant 4.000000e+00 : f32
    %17 = vector.broadcast %cst : f32 to vector<8x128xf32>
    %18 = arith.mulf %17, %16 : vector<8x128xf32>
    %19 = arith.addf %12, %18 : vector<8x128xf32>
    %20 = math.sin %11 : vector<8x128xf32>
    %21 = math.sin %5 : vector<8x128xf32>
    %22 = arith.subf %20, %21 : vector<8x128xf32>
    %cst_15 = arith.constant 4.000000e+00 : f32
    %23 = vector.broadcast %cst_15 : f32 to vector<8x128xf32>
    %24 = arith.mulf %23, %22 : vector<8x128xf32>
    %25 = arith.addf %13, %24 : vector<8x128xf32>
    %26 = arith.mulf %12, %12 : vector<8x128xf32>
    %27 = arith.mulf %13, %13 : vector<8x128xf32>
    %28 = arith.addf %26, %27 : vector<8x128xf32>
    %29 = math.sqrt %28 : vector<8x128xf32>
    %30 = arith.mulf %19, %19 : vector<8x128xf32>
    %31 = arith.mulf %25, %25 : vector<8x128xf32>
    %32 = arith.addf %30, %31 : vector<8x128xf32>
    %33 = math.sqrt %32 : vector<8x128xf32>
    %cst_16 = arith.constant 5.000000e-01 : f32
    %34 = vector.broadcast %cst_16 : f32 to vector<8x128xf32>
    %35 = arith.mulf %29, %34 : vector<8x128xf32>
    %cst_17 = arith.constant 5.000000e-01 : f32
    %36 = vector.broadcast %cst_17 : f32 to vector<8x128xf32>
    %37 = arith.mulf %33, %36 : vector<8x128xf32>
    %38 = arith.addf %35, %37 : vector<8x128xf32>
    %c1024_i32 = arith.constant 1024 : i32
    %39 = arith.muli %arg0, %c1024_i32 : i32
    %40 = tpu.iota {dimensions = array<i32: 0>} : vector<8x128xi32>
    %41 = tpu.iota {dimensions = array<i32: 1>} : vector<8x128xi32>
    %c128_i32 = arith.constant 128 : i32
    %42 = vector.broadcast %c128_i32 : i32 to vector<8x128xi32>
    %43 = arith.muli %40, %42 : vector<8x128xi32>
    %44 = vector.broadcast %39 : i32 to vector<8x128xi32>
    %45 = arith.addi %44, %43 : vector<8x128xi32>
    %46 = arith.addi %45, %41 : vector<8x128xi32>
    %c64_i32 = arith.constant 64 : i32
    %47 = vector.broadcast %c64_i32 : i32 to vector<8x128xi32>
    %48 = arith.cmpi slt, %46, %47 : vector<8x128xi32>
    %49 = vector.shape_cast %38 : vector<8x128xf32> to vector<1x8x128xf32>
    %cst_18 = arith.constant dense<0.000000e+00> : vector<1xf32>
    %50 = vector.multi_reduction <add>, %49, %cst_18 [1, 2] : vector<1x8x128xf32> to vector<1xf32>
    %51 = vector.shape_cast %50 : vector<1xf32> to vector<1x1x1xf32>
    %52 = vector.extract %51[0, 0, 0] : f32 from vector<1x1x1xf32>
    %cst_19 = arith.constant 0xFF800000 : f32
    %53 = vector.broadcast %cst_19 : f32 to vector<8x128xf32>
    %54 = arith.select %48, %38, %53 : vector<8x128xi1>, vector<8x128xf32>
    %55 = vector.shape_cast %54 : vector<8x128xf32> to vector<1x8x128xf32>
    %cst_20 = arith.constant dense<0xFF800000> : vector<1xf32>
    %56 = vector.multi_reduction <maximumf>, %55, %cst_20 [1, 2] : vector<1x8x128xf32> to vector<1xf32>
    %57 = vector.shape_cast %56 : vector<1xf32> to vector<1x1x1xf32>
    %58 = vector.extract %57[0, 0, 0] : f32 from vector<1x1x1xf32>
    %cst_21 = arith.constant 0x7F800000 : f32
    %59 = vector.broadcast %cst_21 : f32 to vector<8x128xf32>
    %60 = arith.select %48, %38, %59 : vector<8x128xi1>, vector<8x128xf32>
    %61 = vector.shape_cast %60 : vector<8x128xf32> to vector<1x8x128xf32>
    %cst_22 = arith.constant dense<0x7F800000> : vector<1xf32>
    %62 = vector.multi_reduction <minimumf>, %61, %cst_22 [1, 2] : vector<1x8x128xf32> to vector<1xf32>
    %63 = vector.shape_cast %62 : vector<1xf32> to vector<1x1x1xf32>
    %64 = vector.extract %63[0, 0, 0] : f32 from vector<1x1x1xf32>
    %65 = vector.broadcast %52 : f32 to vector<1x1x1xf32>
    %66 = vector.shape_cast %65 : vector<1x1x1xf32> to vector<1x1x1xf32>
    %67 = vector.broadcast %66 : vector<1x1x1xf32> to vector<1x8x128xf32>
    %c0_23 = arith.constant 0 : index
    %c0_24 = arith.constant 0 : index
    %c0_25 = arith.constant 0 : index
    %68 = vector.load %arg3[%c0_23, %c0_24, %c0_25] : memref<1x8x128xf32, #tpu.memory_space<vmem>>, vector<1x8x128xf32>
    tpu.vector_store %arg3[%c0_23, %c0_24, %c0_25], %67 {strides = array<i32>} : memref<1x8x128xf32, #tpu.memory_space<vmem>>, vector<1x8x128xf32>,
    %69 = vector.broadcast %58 : f32 to vector<1x1x1xf32>
    %70 = vector.shape_cast %69 : vector<1x1x1xf32> to vector<1x1x1xf32>
    %71 = vector.broadcast %70 : vector<1x1x1xf32> to vector<1x8x128xf32>
    %c0_26 = arith.constant 0 : index
    %c0_27 = arith.constant 0 : index
    %c0_28 = arith.constant 0 : index
    %72 = vector.load %arg4[%c0_26, %c0_27, %c0_28] : memref<1x8x128xf32, #tpu.memory_space<vmem>>, vector<1x8x128xf32>
    tpu.vector_store %arg4[%c0_26, %c0_27, %c0_28], %71 {strides = array<i32>} : memref<1x8x128xf32, #tpu.memory_space<vmem>>, vector<1x8x128xf32>,
    %73 = vector.broadcast %64 : f32 to vector<1x1x1xf32>
    %74 = vector.shape_cast %73 : vector<1x1x1xf32> to vector<1x1x1xf32>
    %75 = vector.broadcast %74 : vector<1x1x1xf32> to vector<1x8x128xf32>
    %c0_29 = arith.constant 0 : index
    %c0_30 = arith.constant 0 : index
    %c0_31 = arith.constant 0 : index
    %76 = vector.load %arg5[%c0_29, %c0_30, %c0_31] : memref<1x8x128xf32, #tpu.memory_space<vmem>>, vector<1x8x128xf32>
    tpu.vector_store %arg5[%c0_29, %c0_30, %c0_31], %75 {strides = array<i32>} : memref<1x8x128xf32, #tpu.memory_space<vmem>>, vector<1x8x128xf32>,
    return
  }
  func.func @transform_0(%arg0: i32) -> (i32, i32, i32) {
    %c0_i32 = arith.constant 0 : i32
    %c0_i32_0 = arith.constant 0 : i32
    %c0_i32_1 = arith.constant 0 : i32
    return %c0_i32, %arg0, %c0_i32_0 : i32, i32, i32
  }
  func.func @transform_1(%arg0: i32) -> (i32, i32, i32) {
    %c0_i32 = arith.constant 0 : i32
    %c0_i32_0 = arith.constant 0 : i32
    %c0_i32_1 = arith.constant 0 : i32
    return %c0_i32, %arg0, %c0_i32_0 : i32, i32, i32
  }
  func.func @transform_2(%arg0: i32) -> (i32, i32, i32) {
    %c0_i32 = arith.constant 0 : i32
    %c0_i32_0 = arith.constant 0 : i32
    %c0_i32_1 = arith.constant 0 : i32
    return %arg0, %c0_i32, %c0_i32_0 : i32, i32, i32
  }
  func.func @transform_3(%arg0: i32) -> (i32, i32, i32) {
    %c0_i32 = arith.constant 0 : i32
    %c0_i32_0 = arith.constant 0 : i32
    %c0_i32_1 = arith.constant 0 : i32
    return %arg0, %c0_i32, %c0_i32_0 : i32, i32, i32
  }
  func.func @transform_4(%arg0: i32) -> (i32, i32, i32) {
    %c0_i32 = arith.constant 0 : i32
    %c0_i32_0 = arith.constant 0 : i32
    %c0_i32_1 = arith.constant 0 : i32
    return %arg0, %c0_i32, %c0_i32_0 : i32, i32, i32
  }
}

</mosaic_0001>

<llo_original>
// kernel: tpu_custom_call.1
$region0: #{tpu_custom_call.1}
  #allocation0 [shape = 'u32[]', space=smem, size = 0x4, offset = 0x4, fixed_abs, tag = 'smem constant byte address 0x4 - core index']
  #allocation1 [shape = 'u32[144,128]{1,0:T(1,128)}', space=vmem, size = 0x12000, scoped, tag = 'internal scratch']
  %s0 = inlined_call_operand.hbm [shape: f32[3,8,128], index: 0, kind: input, shape index: {}]
  %s1 = inlined_call_operand.hbm [shape: f32[3,8,128], index: 1, kind: input, shape index: {}]
  %s2 = inlined_call_operand.hbm [shape: f32[1,8,128], index: 2, kind: output, shape index: {0}]
  %s3 = inlined_call_operand.hbm [shape: f32[1,8,128], index: 3, kind: output, shape index: {1}]
  %s4 = inlined_call_operand.hbm [shape: f32[1,8,128], index: 4, kind: output, shape index: {2}]
  %5 = xla_tuple %s2, %s3, %s4
  %s6 = sld [smem:[#allocation0]]
  $region42: #{tpu_custom_call.1} parent=0
    _
  %s8 = ssub.s32 1, %s6
  %s9 = scalar_select 0, %s8, %s6
  $region1: #{tpu_custom_call.1} parent=0
    #allocation2 [shape = 'u8[12288]{0}', space=vmem, size = 0x3000, scoped, tag = 'input window, operand 0, single buffered']
    #allocation3 [shape = 's32[1]{0}', space=sflag, size = 0x4, scoped, tag = 'scoped memory for tpu_custom_call.1']
    #allocation4 [shape = 's32[1]{0}', space=sflag, size = 0x4, scoped, tag = 'scoped memory for tpu_custom_call.1']
    #allocation5 [shape = 'u8[12288]{0}', space=vmem, size = 0x3000, scoped, tag = 'input window, operand 1, single buffered']
    #allocation6 [shape = 's32[1]{0}', space=sflag, size = 0x4, scoped, tag = 'scoped memory for tpu_custom_call.1']
    #allocation7 [shape = 'u8[4096]{0}', space=vmem, size = 0x1000, scoped, tag = 'output window, operand 0, single buffered']
    #allocation8 [shape = 'u8[4096]{0}', space=vmem, size = 0x1000, scoped, tag = 'output window, operand 1, single buffered']
    #allocation9 [shape = 's32[1]{0}', space=sflag, size = 0x4, scoped, tag = 'scoped memory for tpu_custom_call.1']
    #allocation10 [shape = 'u8[4096]{0}', space=vmem, size = 0x1000, scoped, tag = 'output window, operand 2, single buffered']
    %10 = vsyncpa [#allocation3], 0
    %11 = vsyncpa [#allocation6], 0
    %12 = vsyncpa [#allocation4], 0
    %13 = vsyncpa [#allocation9], 0
    // Predicated region
    $region2: #{tpu_custom_call.1} parent=1 // pred_check
      _
    $region3: #{tpu_custom_call.1} parent=1 // pred_check_branch
      %15 = sbr.rel (0) target = $region5
    $region4: #{tpu_custom_call.1} parent=1 // pred_region
      %s17 = ssub.s32 384, 384
      %18 = vsyncadd [#allocation3], %s17
      %s19 = sshll.u32 [#allocation2], 4
      %s20 = int_to_ptr.vmem [resolvable:$true] %s19
      %25 = dma.hbm_to_vmem [thread:$0]  %s0, 384, %s20, [#allocation3], 128, 128, 8
    $region5: #{tpu_custom_call.1} parent=1 // pred_fallthru
      _
    // Predicated region
    $region6: #{tpu_custom_call.1} parent=1 // pred_check
      _
    $region7: #{tpu_custom_call.1} parent=1 // pred_check_branch
      %27 = sbr.rel (0) target = $region9
    $region8: #{tpu_custom_call.1} parent=1 // pred_region
      %s29 = ssub.s32 384, 384
      %30 = vsyncadd [#allocation6], %s29
      %s31 = sshll.u32 [#allocation5], 4
      %s32 = int_to_ptr.vmem [resolvable:$true] %s31
      %37 = dma.hbm_to_vmem [thread:$0]  %s1, 384, %s32, [#allocation6], 128, 128, 8
    $region9: #{tpu_custom_call.1} parent=1 // pred_fallthru
      _
    // Predicated region
    $region10: #{tpu_custom_call.1} parent=1 // pred_check
      _
    $region11: #{tpu_custom_call.1} parent=1 // pred_check_branch
      %39 = sbr.rel (0) target = $region13
    $region12: #{tpu_custom_call.1} parent=1 // pred_region
      %40 = dma.done [#allocation3], 384
    $region13: #{tpu_custom_call.1} parent=1 // pred_fallthru
      _
    // Predicated region
    $region14: #{tpu_custom_call.1} parent=1 // pred_check
      _
    $region15: #{tpu_custom_call.1} parent=1 // pred_check_branch
      %42 = sbr.rel (0) target = $region17
    $region16: #{tpu_custom_call.1} parent=1 // pred_region
      %43 = dma.done [#allocation6], 384
    $region17: #{tpu_custom_call.1} parent=1 // pred_fallthru
      _
    %v44 = vld [vmem:[#allocation2] sm:$0xff]
    %s45 = scalar_lea.vmem [#allocation2], 8
    %v46 = vld [vmem:[%s45] sm:$0xff]
    %s47 = scalar_lea.vmem [#allocation2], 16
    %v48 = vld [vmem:[%s47] sm:$0xff]
    %v49 = vld [vmem:[#allocation5] sm:$0xff]
    %s50 = scalar_lea.vmem [#allocation5], 8
    %v51 = vld [vmem:[%s50] sm:$0xff]
    %s52 = scalar_lea.vmem [#allocation5], 16
    %v53 = vld [vmem:[%s52] sm:$0xff]
    %v54 = vsub.f32 %v49, %v44
    %v55 = vsub.f32 %v51, %v46
    %v56 = vand.u32 2147483647, %v53
    %vm57 = vcmp.le.f32.partialorder %v56, 0.7853982
    %vm58 = vcmp.lt.s32.totalorder %v53, 0
    %v59 = vand.u32 %v53, 2139095040
    %v60 = vshrl.u32 %v59, 23
    %v61 = vsub.s32 %v60, 127
    %v62 = vand.u32 2147483647, %v53
    %v63 = vand.u32 %v62, 8388607
    %v64 = vor.u32 %v63, 8388608
    %v65 = vsub.s32 0, %v64
    %v66 = vadd.s32 %v61, 1
    %vm67 = vcmp.gt.s32.totalorder %v66, 0
    %v68 = vsel %vm67, %v66, 0
    %v69 = vshrl.u32 %v68, 5
    %v70 = vand.u32 %v68, 31
    %v71 = vsub.s32 32, %v70
    %v72 = vshrl.u32 683565275, %v71
    %v73 = vshll.u32 683565275, %v70
    %v74 = vshrl.u32 2475754826, %v71
    %v75 = vor.u32 %v73, %v74
    %v76 = vshll.u32 2475754826, %v70
    %v77 = vshrl.u32 2131351028, %v71
    %v78 = vor.u32 %v76, %v77
    %v79 = vshll.u32 2131351028, %v70
    %v80 = vshrl.u32 2102212464, %v71
    %v81 = vor.u32 %v79, %v80
    %v82 = vshll.u32 2102212464, %v70
    %v83 = vshrl.u32 920167782, %v71
    %v84 = vor.u32 %v82, %v83
    %v85 = vshll.u32 920167782, %v70
    %v86 = vshrl.u32 1326507024, %v71
    %v87 = vor.u32 %v85, %v86
    %vm88 = vcmp.lt.s32.totalorder %v69, 1
    %vm89 = vcmp.lt.s32.totalorder %v69, 2
    %vm90 = vcmp.lt.s32.totalorder %v69, 3
    %vm91 = vcmp.lt.s32.totalorder %v69, 4
    %v92 = vsel %vm88, %v72, %v75
    %v93 = vsel %vm91, %v81, 2102212464
    %v94 = vsel %vm90, %v78, %v93
    %v95 = vsel %vm89, %v92, %v94
    %v96 = vsel %vm88, %v75, %v78
    %v97 = vsel %vm91, %v84, 920167782
    %v98 = vsel %vm90, %v81, %v97
    %v99 = vsel %vm89, %v96, %v98
    %v100 = vsel %vm88, %v78, %v81
    %v101 = vsel %vm91, %v87, 1326507024
    %v102 = vsel %vm90, %v84, %v101
    %v103 = vsel %vm89, %v100, %v102
    %v104 = vshll.u32 %v64, 8
    %v105 = vmul.u32.u64.compose %v104, %v103
    %v106 = vextract.low.u32 %v105
    %v107 = vextract.high.u32 %v105
    %v108 = vmul.u32.u64.compose %v104, %v99
    %v109 = vextract.low.u32 %v108
    %v110 = vextract.high.u32 %v108
    %v111 = vmul.u32 %v104, %v95
    %v112 = vadd.s32 %v107, %v109
    %vm113 = vc.u32 %v107, %v109
    %v114 = vadd.s32 %v110, 1
    %v115 = vsel %vm113, %v114, %v110
    %v116 = vadd.s32 %v111, %v115
    %v117 = vadd.s32 %v116, 536870912
    %v118 = vshrl.u32 %v117, 30
    %v119 = vshll.u32 %v118, 30
    %v120 = vsub.s32 %v116, %v119
    %vm121 = vcmp.lt.s32.totalorder %v120, 0
    %v122 = vsub.s32 0, %v120
    %v123 = vsel %vm121, %v122, %v120
    %v124 = vclz %v123
    %v125 = vsub.s32 %v124, 2
    %vm126 = vcmp.gt.s32.totalorder 0, %v125
    %v127 = vsel %vm126, 0, %v125
    %v128 = vsub.s32 32, %v127
    %v129 = vshll.u32 %v120, %v127
    %v130 = vshrl.u32 %v112, %v128
    %v131 = vor.u32 %v129, %v130
    %v132 = vsub.s32 4294967266, %v127
    %v133 = vadd.s32 %v132, 127
    %v134 = vshll.u32 %v133, 23
    %v135 = vor.u32 4788187, %v134
    %v136 = vand.u32 2147483647, %v135
    %v138 = vcvt.s32.f32 %v131
    %v139 = vmul.f32 %v138, %v136
    %v140 = vxor.u32 %v139, 2147483648
    %v141 = vsel %vm58, %v140, %v139
    %v142 = vsub.s32 4, %v118
    %v143 = vsel %vm58, %v142, %v118
    %v144 = vsel %vm57, %v53, %v141
    %v145 = vsel %vm57, 0, %v143
    %v146 = vcosq.f32.pop %v144
    %v147 = vsinq.f32.pop %v144
    %vm148 = vweird.f32 %v53
    %v149 = vand.u32 %v145, 3
    %vm150 = vcmp.lt.s32.totalorder %v149, 2
    %vm151 = vcmp.eq.s32.totalorder %v149, 0
    %v152 = vxor.u32 %v147, 2147483648
    %v153 = vsel %vm151, %v146, %v152
    %vm154 = vcmp.eq.s32.totalorder %v149, 2
    %v155 = vxor.u32 %v146, 2147483648
    %v156 = vsel %vm154, %v155, %v147
    %v157 = vsel %vm150, %v153, %v156
    %v158 = vsel %vm148, nan, %v157
    %v159 = vand.u32 2147483647, %v48
    %vm160 = vcmp.le.f32.partialorder %v159, 0.7853982
    %vm161 = vcmp.lt.s32.totalorder %v48, 0
    %v162 = vand.u32 %v48, 2139095040
    %v163 = vshrl.u32 %v162, 23
    %v164 = vsub.s32 %v163, 127
    %v165 = vand.u32 2147483647, %v48
    %v166 = vand.u32 %v165, 8388607
    %v167 = vor.u32 %v166, 8388608
    %v168 = vsub.s32 0, %v167
    %v169 = vadd.s32 %v164, 1
    %vm170 = vcmp.gt.s32.totalorder %v169, 0
    %v171 = vsel %vm170, %v169, 0
    %v172 = vshrl.u32 %v171, 5
    %v173 = vand.u32 %v171, 31
    %v174 = vsub.s32 32, %v173
    %v175 = vshrl.u32 683565275, %v174
    %v176 = vshll.u32 683565275, %v173
    %v177 = vshrl.u32 2475754826, %v174
    %v178 = vor.u32 %v176, %v177
    %v179 = vshll.u32 2475754826, %v173
    %v180 = vshrl.u32 2131351028, %v174
    %v181 = vor.u32 %v179, %v180
    %v182 = vshll.u32 2131351028, %v173
    %v183 = vshrl.u32 2102212464, %v174
    %v184 = vor.u32 %v182, %v183
    %v185 = vshll.u32 2102212464, %v173
    %v186 = vshrl.u32 920167782, %v174
    %v187 = vor.u32 %v185, %v186
    %v188 = vshll.u32 920167782, %v173
    %v189 = vshrl.u32 1326507024, %v174
    %v190 = vor.u32 %v188, %v189
    %vm191 = vcmp.lt.s32.totalorder %v172, 1
    %vm192 = vcmp.lt.s32.totalorder %v172, 2
    %vm193 = vcmp.lt.s32.totalorder %v172, 3
    %vm194 = vcmp.lt.s32.totalorder %v172, 4
    %v195 = vsel %vm191, %v175, %v178
    %v196 = vsel %vm194, %v184, 2102212464
    %v197 = vsel %vm193, %v181, %v196
    %v198 = vsel %vm192, %v195, %v197
    %v199 = vsel %vm191, %v178, %v181
    %v200 = vsel %vm194, %v187, 920167782
    %v201 = vsel %vm193, %v184, %v200
    %v202 = vsel %vm192, %v199, %v201
    %v203 = vsel %vm191, %v181, %v184
    %v204 = vsel %vm194, %v190, 1326507024
    %v205 = vsel %vm193, %v187, %v204
    %v206 = vsel %vm192, %v203, %v205
    %v207 = vshll.u32 %v167, 8
    %v208 = vmul.u32.u64.compose %v207, %v206
    %v209 = vextract.low.u32 %v208
    %v210 = vextract.high.u32 %v208
    %v211 = vmul.u32.u64.compose %v207, %v202
    %v212 = vextract.low.u32 %v211
    %v213 = vextract.high.u32 %v211
    %v214 = vmul.u32 %v207, %v198
    %v215 = vadd.s32 %v210, %v212
    %vm216 = vc.u32 %v210, %v212
    %v217 = vadd.s32 %v213, 1
    %v218 = vsel %vm216, %v217, %v213
    %v219 = vadd.s32 %v214, %v218
    %v220 = vadd.s32 %v219, 536870912
    %v221 = vshrl.u32 %v220, 30
    %v222 = vshll.u32 %v221, 30
    %v223 = vsub.s32 %v219, %v222
    %vm224 = vcmp.lt.s32.totalorder %v223, 0
    %v225 = vsub.s32 0, %v223
    %v226 = vsel %vm224, %v225, %v223
    %v227 = vclz %v226
    %v228 = vsub.s32 %v227, 2
    %vm229 = vcmp.gt.s32.totalorder 0, %v228
    %v230 = vsel %vm229, 0, %v228
    %v231 = vsub.s32 32, %v230
    %v232 = vshll.u32 %v223, %v230
    %v233 = vshrl.u32 %v215, %v231
    %v234 = vor.u32 %v232, %v233
    %v235 = vsub.s32 4294967266, %v230
    %v236 = vadd.s32 %v235, 127
    %v237 = vshll.u32 %v236, 23
    %v238 = vor.u32 4788187, %v237
    %v239 = vand.u32 2147483647, %v238
    %v241 = vcvt.s32.f32 %v234
    %v242 = vmul.f32 %v241, %v239
    %v243 = vxor.u32 %v242, 2147483648
    %v244 = vsel %vm161, %v243, %v242
    %v245 = vsub.s32 4, %v221
    %v246 = vsel %vm161, %v245, %v221
    %v247 = vsel %vm160, %v48, %v244
    %v248 = vsel %vm160, 0, %v246
    %v249 = vcosq.f32.pop %v247
    %v250 = vsinq.f32.pop %v247
    %vm251 = vweird.f32 %v48
    %v252 = vand.u32 %v248, 3
    %vm253 = vcmp.lt.s32.totalorder %v252, 2
    %vm254 = vcmp.eq.s32.totalorder %v252, 0
    %v255 = vxor.u32 %v250, 2147483648
    %v256 = vsel %vm254, %v249, %v255
    %vm257 = vcmp.eq.s32.totalorder %v252, 2
    %v258 = vxor.u32 %v249, 2147483648
    %v259 = vsel %vm257, %v258, %v250
    %v260 = vsel %vm253, %v256, %v259
    %v261 = vsel %vm251, nan, %v260
    %v262 = vsub.f32 %v158, %v261
    %v263 = vmul.f32 %v262, 4.0
    %v264 = vadd.f32 %v54, %v263
    %v265 = vand.u32 2147483647, %v53
    %vm266 = vcmp.le.f32.partialorder %v265, 0.7853982
    %vm267 = vcmp.lt.s32.totalorder %v53, 0
    %v268 = vand.u32 %v53, 2139095040
    %v269 = vshrl.u32 %v268, 23
    %v270 = vsub.s32 %v269, 127
    %v271 = vand.u32 2147483647, %v53
    %v272 = vand.u32 %v271, 8388607
    %v273 = vor.u32 %v272, 8388608
    %v274 = vsub.s32 0, %v273
    %v275 = vadd.s32 %v270, 1
    %vm276 = vcmp.gt.s32.totalorder %v275, 0
    %v277 = vsel %vm276, %v275, 0
    %v278 = vshrl.u32 %v277, 5
    %v279 = vand.u32 %v277, 31
    %v280 = vsub.s32 32, %v279
    %v281 = vshrl.u32 683565275, %v280
    %v282 = vshll.u32 683565275, %v279
    %v283 = vshrl.u32 2475754826, %v280
    %v284 = vor.u32 %v282, %v283
    %v285 = vshll.u32 2475754826, %v279
    %v286 = vshrl.u32 2131351028, %v280
    %v287 = vor.u32 %v285, %v286
    %v288 = vshll.u32 2131351028, %v279
    %v289 = vshrl.u32 2102212464, %v280
    %v290 = vor.u32 %v288, %v289
    %v291 = vshll.u32 2102212464, %v279
    %v292 = vshrl.u32 920167782, %v280
    %v293 = vor.u32 %v291, %v292
    %v294 = vshll.u32 920167782, %v279
    %v295 = vshrl.u32 1326507024, %v280
    %v296 = vor.u32 %v294, %v295
    %vm297 = vcmp.lt.s32.totalorder %v278, 1
    %vm298 = vcmp.lt.s32.totalorder %v278, 2
    %vm299 = vcmp.lt.s32.totalorder %v278, 3
    %vm300 = vcmp.lt.s32.totalorder %v278, 4
    %v301 = vsel %vm297, %v281, %v284
    %v302 = vsel %vm300, %v290, 2102212464
    %v303 = vsel %vm299, %v287, %v302
    %v304 = vsel %vm298, %v301, %v303
    %v305 = vsel %vm297, %v284, %v287
    %v306 = vsel %vm300, %v293, 920167782
    %v307 = vsel %vm299, %v290, %v306
    %v308 = vsel %vm298, %v305, %v307
    %v309 = vsel %vm297, %v287, %v290
    %v310 = vsel %vm300, %v296, 1326507024
    %v311 = vsel %vm299, %v293, %v310
    %v312 = vsel %vm298, %v309, %v311
    %v313 = vshll.u32 %v273, 8
    %v314 = vmul.u32.u64.compose %v313, %v312
    %v315 = vextract.low.u32 %v314
    %v316 = vextract.high.u32 %v314
    %v317 = vmul.u32.u64.compose %v313, %v308
    %v318 = vextract.low.u32 %v317
    %v319 = vextract.high.u32 %v317
    %v320 = vmul.u32 %v313, %v304
    %v321 = vadd.s32 %v316, %v318
    %vm322 = vc.u32 %v316, %v318
    %v323 = vadd.s32 %v319, 1
    %v324 = vsel %vm322, %v323, %v319
    %v325 = vadd.s32 %v320, %v324
    %v326 = vadd.s32 %v325, 536870912
    %v327 = vshrl.u32 %v326, 30
    %v328 = vshll.u32 %v327, 30
    %v329 = vsub.s32 %v325, %v328
    %vm330 = vcmp.lt.s32.totalorder %v329, 0
    %v331 = vsub.s32 0, %v329
    %v332 = vsel %vm330, %v331, %v329
    %v333 = vclz %v332
    %v334 = vsub.s32 %v333, 2
    %vm335 = vcmp.gt.s32.totalorder 0, %v334
    %v336 = vsel %vm335, 0, %v334
    %v337 = vsub.s32 32, %v336
    %v338 = vshll.u32 %v329, %v336
    %v339 = vshrl.u32 %v321, %v337
    %v340 = vor.u32 %v338, %v339
    %v341 = vsub.s32 4294967266, %v336
    %v342 = vadd.s32 %v341, 127
    %v343 = vshll.u32 %v342, 23
    %v344 = vor.u32 4788187, %v343
    %v345 = vand.u32 2147483647, %v344
    %v347 = vcvt.s32.f32 %v340
    %v348 = vmul.f32 %v347, %v345
    %v349 = vxor.u32 %v348, 2147483648
    %v350 = vsel %vm267, %v349, %v348
    %v351 = vsub.s32 4, %v327
    %v352 = vsel %vm267, %v351, %v327
    %v353 = vsel %vm266, %v53, %v350
    %v354 = vsel %vm266, 0, %v352
    %v355 = vcosq.f32.pop %v353
    %v356 = vsinq.f32.pop %v353
    %vm357 = vweird.f32 %v53
    %v358 = vadd.s32 %v354, 3
    %v359 = vand.u32 %v358, 3
    %vm360 = vcmp.lt.s32.totalorder %v359, 2
    %vm361 = vcmp.eq.s32.totalorder %v359, 0
    %v362 = vxor.u32 %v356, 2147483648
    %v363 = vsel %vm361, %v355, %v362
    %vm364 = vcmp.eq.s32.totalorder %v359, 2
    %v365 = vxor.u32 %v355, 2147483648
    %v366 = vsel %vm364, %v365, %v356
    %v367 = vsel %vm360, %v363, %v366
    %v368 = vsel %vm357, nan, %v367
    %v369 = vand.u32 2147483647, %v48
    %vm370 = vcmp.le.f32.partialorder %v369, 0.7853982
    %vm371 = vcmp.lt.s32.totalorder %v48, 0
    %v372 = vand.u32 %v48, 2139095040
    %v373 = vshrl.u32 %v372, 23
    %v374 = vsub.s32 %v373, 127
    %v375 = vand.u32 2147483647, %v48
    %v376 = vand.u32 %v375, 8388607
    %v377 = vor.u32 %v376, 8388608
    %v378 = vsub.s32 0, %v377
    %v379 = vadd.s32 %v374, 1
    %vm380 = vcmp.gt.s32.totalorder %v379, 0
    %v381 = vsel %vm380, %v379, 0
    %v382 = vshrl.u32 %v381, 5
    %v383 = vand.u32 %v381, 31
    %v384 = vsub.s32 32, %v383
    %v385 = vshrl.u32 683565275, %v384
    %v386 = vshll.u32 683565275, %v383
    %v387 = vshrl.u32 2475754826, %v384
    %v388 = vor.u32 %v386, %v387
    %v389 = vshll.u32 2475754826, %v383
    %v390 = vshrl.u32 2131351028, %v384
    %v391 = vor.u32 %v389, %v390
    %v392 = vshll.u32 2131351028, %v383
    %v393 = vshrl.u32 2102212464, %v384
    %v394 = vor.u32 %v392, %v393
    %v395 = vshll.u32 2102212464, %v383
    %v396 = vshrl.u32 920167782, %v384
    %v397 = vor.u32 %v395, %v396
    %v398 = vshll.u32 920167782, %v383
    %v399 = vshrl.u32 1326507024, %v384
    %v400 = vor.u32 %v398, %v399
    %vm401 = vcmp.lt.s32.totalorder %v382, 1
    %vm402 = vcmp.lt.s32.totalorder %v382, 2
    %vm403 = vcmp.lt.s32.totalorder %v382, 3
    %vm404 = vcmp.lt.s32.totalorder %v382, 4
    %v405 = vsel %vm401, %v385, %v388
    %v406 = vsel %vm404, %v394, 2102212464
    %v407 = vsel %vm403, %v391, %v406
    %v408 = vsel %vm402, %v405, %v407
    %v409 = vsel %vm401, %v388, %v391
    %v410 = vsel %vm404, %v397, 920167782
    %v411 = vsel %vm403, %v394, %v410
    %v412 = vsel %vm402, %v409, %v411
    %v413 = vsel %vm401, %v391, %v394
    %v414 = vsel %vm404, %v400, 1326507024
    %v415 = vsel %vm403, %v397, %v414
    %v416 = vsel %vm402, %v413, %v415
    %v417 = vshll.u32 %v377, 8
    %v418 = vmul.u32.u64.compose %v417, %v416
    %v419 = vextract.low.u32 %v418
    %v420 = vextract.high.u32 %v418
    %v421 = vmul.u32.u64.compose %v417, %v412
    %v422 = vextract.low.u32 %v421
    %v423 = vextract.high.u32 %v421
    %v424 = vmul.u32 %v417, %v408
    %v425 = vadd.s32 %v420, %v422
    %vm426 = vc.u32 %v420, %v422
    %v427 = vadd.s32 %v423, 1
    %v428 = vsel %vm426, %v427, %v423
    %v429 = vadd.s32 %v424, %v428
    %v430 = vadd.s32 %v429, 536870912
    %v431 = vshrl.u32 %v430, 30
    %v432 = vshll.u32 %v431, 30
    %v433 = vsub.s32 %v429, %v432
    %vm434 = vcmp.lt.s32.totalorder %v433, 0
    %v435 = vsub.s32 0, %v433
    %v436 = vsel %vm434, %v435, %v433
    %v437 = vclz %v436
    %v438 = vsub.s32 %v437, 2
    %vm439 = vcmp.gt.s32.totalorder 0, %v438
    %v440 = vsel %vm439, 0, %v438
    %v441 = vsub.s32 32, %v440
    %v442 = vshll.u32 %v433, %v440
    %v443 = vshrl.u32 %v425, %v441
    %v444 = vor.u32 %v442, %v443
    %v445 = vsub.s32 4294967266, %v440
    %v446 = vadd.s32 %v445, 127
    %v447 = vshll.u32 %v446, 23
    %v448 = vor.u32 4788187, %v447
    %v449 = vand.u32 2147483647, %v448
    %v451 = vcvt.s32.f32 %v444
    %v452 = vmul.f32 %v451, %v449
    %v453 = vxor.u32 %v452, 2147483648
    %v454 = vsel %vm371, %v453, %v452
    %v455 = vsub.s32 4, %v431
    %v456 = vsel %vm371, %v455, %v431
    %v457 = vsel %vm370, %v48, %v454
    %v458 = vsel %vm370, 0, %v456
    %v459 = vcosq.f32.pop %v457
    %v460 = vsinq.f32.pop %v457
    %vm461 = vweird.f32 %v48
    %v462 = vadd.s32 %v458, 3
    %v463 = vand.u32 %v462, 3
    %vm464 = vcmp.lt.s32.totalorder %v463, 2
    %vm465 = vcmp.eq.s32.totalorder %v463, 0
    %v466 = vxor.u32 %v460, 2147483648
    %v467 = vsel %vm465, %v459, %v466
    %vm468 = vcmp.eq.s32.totalorder %v463, 2
    %v469 = vxor.u32 %v459, 2147483648
    %v470 = vsel %vm468, %v469, %v460
    %v471 = vsel %vm464, %v467, %v470
    %v472 = vsel %vm461, nan, %v471
    %v473 = vsub.f32 %v368, %v472
    %v474 = vmul.f32 %v473, 4.0
    %v475 = vadd.f32 %v55, %v474
    %v476 = vmul.f32 %v54, %v54
    %v477 = vmul.f32 %v55, %v55
    %v478 = vadd.f32 %v476, %v477
    %v479 = vrsqrt.pop %v478
    %v480 = vmul.f32 %v478, %v479
    %vm481 = vcmp.eq.f32.partialorder %v478, inf
    %v482 = vsel %vm481, %v478, %v480
    %vm483 = vcmp.eq.f32.partialorder %v478, 0.0
    %v484 = vand.u32 %v478, 2147483648
    %v485 = vsel %vm483, %v484, %v482
    %v486 = vmul.f32 %v264, %v264
    %v487 = vmul.f32 %v475, %v475
    %v488 = vadd.f32 %v486, %v487
    %v489 = vrsqrt.pop %v488
    %v490 = vmul.f32 %v488, %v489
    %vm491 = vcmp.eq.f32.partialorder %v488, inf
    %v492 = vsel %vm491, %v488, %v490
    %vm493 = vcmp.eq.f32.partialorder %v488, 0.0
    %v494 = vand.u32 %v488, 2147483648
    %v495 = vsel %vm493, %v494, %v492
    %v496 = vmul.f32 %v485, 0.5
    %v497 = vmul.f32 %v495, 0.5
    %v498 = vadd.f32 %v496, %v497
    %s499 = smul.u32 0, 1024
    %v500 = vlaneseq
    %v501 = vshrl.u32 %v500, 7
    %v502 = vlaneseq
    %v503 = vand.u32 %v502, 127
    %v504 = vmul.u32 %v501, 128
    %v505 = vstv %s499
    %v506 = vadd.s32 %v505, %v504
    %v507 = vadd.s32 %v506, %v503
    %vm508 = vcmp.lt.s32.totalorder %v507, 64
    %509 = vadd.xlane.f32.xlu0 %v498
    %v510 = vpop.xlane.xlu0 %509
    %v511 = vrot.slane %v510, 4
    %v512 = vadd.f32 %v510, %v511
    %v513 = vrot.slane %v512, 2
    %v514 = vadd.f32 %v512, %v513
    %v515 = vrot.slane %v514, 1
    %v516 = vadd.f32 %v514, %v515
    %s517 = vtos %v516
    %v518 = vsel %vm508, %v498, -inf
    %519 = vmax.xlane.f32.xlu0 %v518
    %v520 = vpop.xlane.xlu0 %519
    %v521 = vrot.slane %v520, 4
    %v522 = vmax.f32 %v520, %v521
    %v523 = vrot.slane %v522, 2
    %v524 = vmax.f32 %v522, %v523
    %v525 = vrot.slane %v524, 1
    %v526 = vmax.f32 %v524, %v525
    %s527 = vtos %v526
    %v528 = vsel %vm508, %v498, inf
    %529 = vmin.xlane.f32.xlu0 %v528
    %v530 = vpop.xlane.xlu0 %529
    %v531 = vrot.slane %v530, 4
    %v532 = vmin.f32 %v530, %v531
    %v533 = vrot.slane %v532, 2
    %v534 = vmin.f32 %v532, %v533
    %v535 = vrot.slane %v534, 1
    %v536 = vmin.f32 %v534, %v535
    %s537 = vtos %v536
    %v538 = vstv %s517
    %539 = vst [vmem:[#allocation7] sm:$0xff] %v538
    %v540 = vstv %s527
    %541 = vst [vmem:[#allocation8] sm:$0xff] %v540
    %v542 = vstv %s537
    %543 = vst [vmem:[#allocation10] sm:$0xff] %v542
    // Predicated region
    $region18: #{tpu_custom_call.1} parent=1 // pred_check
      _
    $region19: #{tpu_custom_call.1} parent=1 // pred_check_branch
      %545 = sbr.rel (0) target = $region21
    $region20: #{tpu_custom_call.1} parent=1 // pred_region
      %s547 = ssub.s32 128, 128
      %548 = vsyncadd [#allocation4], %s547
      %s550 = sshll.u32 [#allocation7], 4
      %s551 = int_to_ptr.vmem [resolvable:$true] %s550
      %553 = dma.vmem_to_hbm [thread:$0]  %s551, 128, %s2, [#allocation4]
    $region21: #{tpu_custom_call.1} parent=1 // pred_fallthru
      _
    // Predicated region
    $region22: #{tpu_custom_call.1} parent=1 // pred_check
      _
    $region23: #{tpu_custom_call.1} parent=1 // pred_check_branch
      %555 = sbr.rel (0) target = $region25
    $region24: #{tpu_custom_call.1} parent=1 // pred_region
      %s557 = ssub.s32 128, 128
      %558 = vsyncadd [#allocation9], %s557
      %s560 = sshll.u32 [#allocation8], 4
      %s561 = int_to_ptr.vmem [resolvable:$true] %s560
      %563 = dma.vmem_to_hbm [thread:$0]  %s561, 128, %s3, [#allocation9]
    $region25: #{tpu_custom_call.1} parent=1 // pred_fallthru
      _
    // Predicated region
    $region26: #{tpu_custom_call.1} parent=1 // pred_check
      _
    $region27: #{tpu_custom_call.1} parent=1 // pred_check_branch
      %565 = sbr.rel (0) target = $region29
    $region28: #{tpu_custom_call.1} parent=1 // pred_region
      %s567 = ssub.s32 128, 128
      %568 = vsyncadd [#allocation9], %s567
      %s570 = sshll.u32 [#allocation10], 4
      %s571 = int_to_ptr.vmem [resolvable:$true] %s570
      %573 = dma.vmem_to_hbm [thread:$0]  %s571, 128, %s4, [#allocation9]
    $region29: #{tpu_custom_call.1} parent=1 // pred_fallthru
      _
    // Predicated region
    $region30: #{tpu_custom_call.1} parent=1 // pred_check
      _
    $region31: #{tpu_custom_call.1} parent=1 // pred_check_branch
      %575 = sbr.rel (0) target = $region33
    $region32: #{tpu_custom_call.1} parent=1 // pred_region
      %576 = dma.done [#allocation4], 128
    $region33: #{tpu_custom_call.1} parent=1 // pred_fallthru
      _
    // Predicated region
    $region34: #{tpu_custom_call.1} parent=1 // pred_check
      _
    $region35: #{tpu_custom_call.1} parent=1 // pred_check_branch
      %578 = sbr.rel (0) target = $region37
    $region36: #{tpu_custom_call.1} parent=1 // pred_region
      %579 = dma.done [#allocation9], 128
    $region37: #{tpu_custom_call.1} parent=1 // pred_fallthru
      _
    // Predicated region
    $region38: #{tpu_custom_call.1} parent=1 // pred_check
      _
    $region39: #{tpu_custom_call.1} parent=1 // pred_check_branch
      %581 = sbr.rel (0) target = $region41
    $region40: #{tpu_custom_call.1} parent=1 // pred_region
      %582 = dma.done [#allocation9], 128
    $region41: #{tpu_custom_call.1} parent=1 // pred_fallthru
      _
    %583 = vsyncpa [#allocation3], 1
    %584 = vsyncpa [#allocation6], 1
    %585 = vsyncpa [#allocation4], 1
    %586 = vsyncpa [#allocation9], 1

</llo_original>
